<compile_context>
chip_gen: v7x
topology: tpu7x:2x2x1
jax: 0.10.0
libtpu: 0.0.40
codegen_flags: <defaults>
</compile_context>

<pallas_src>
import jax
import jax.numpy as jnp
from jax import lax
from jax.experimental import pallas as pl
from jax.experimental.pallas import tpu as pltpu


_LANES = 128
_SUBLANE_PAD = 32               # row granularity safe for f32/bf16/int8 blocks
_MAX_TILE_ROWS = 2048           # (2048,128) f32 tile = 1 MiB per pipeline buffer
_MIN_PALLAS_ELEMENTS = 32768    # below this, fused XLA beats kernel overhead


def _round_up(x, m):
    return ((x + m - 1) // m) * m


def _make_wbce_kernel(n, tile_rows, tiles_per_chunk):
    """Kernel accumulating per-chunk (4, 8, 128) vreg-shaped partial sums:
    [pos_count, neg_count, pos*loss, neg*loss]."""

    def kernel(logit_ref, truth_ref, out_ref):
        c = pl.program_id(0)
        t = pl.program_id(1)

        @pl.when(t == 0)
        def _init():
            out_ref[...] = jnp.zeros_like(out_ref)

        x = logit_ref[...].astype(jnp.float32)
        y = truth_ref[...].astype(jnp.float32)

        # Validity mask: global element index < n.  Handles (a) the ragged
        # last tile (OOB reads are undefined on TPU), (b) the lane/sublane
        # alignment pad, and (c) duplicated trailing iterations whose block
        # index was clamped in the index_map.
        block_idx = c * tiles_per_chunk + t
        row_ids = block_idx * tile_rows + lax.broadcasted_iota(
            jnp.int32, (tile_rows, _LANES), 0)
        lane_ids = lax.broadcasted_iota(jnp.int32, (tile_rows, _LANES), 1)
        valid = (row_ids * _LANES + lane_ids) < n

        # Numerically stable binary_cross_entropy_with_logits (reduction='none'):
        #   loss = max(x, 0) - x*y + log1p(exp(-|x|))
        loss = jnp.maximum(x, 0.0) - x * y + jnp.log1p(jnp.exp(-jnp.abs(x)))

        pos = jnp.logical_and(valid, y > 0.5)
        neg = jnp.logical_and(valid, y < 0.5)

        zero = jnp.zeros_like(loss)
        one = jnp.ones_like(loss)

        def tile_sum(v):
            # (tile_rows, 128) -> (8, 128): pure cross-vreg VPU adds, no XLU.
            return jnp.sum(v.reshape(tile_rows // 8, 8, _LANES), axis=0)

        out_ref[0, 0, :, :] += tile_sum(jnp.where(pos, one, zero))
        out_ref[0, 1, :, :] += tile_sum(jnp.where(neg, one, zero))
        out_ref[0, 2, :, :] += tile_sum(jnp.where(pos, loss, zero))
        out_ref[0, 3, :, :] += tile_sum(jnp.where(neg, loss, zero))

    return kernel


def _wbce_xla(logit_flat, truth_flat, pos_weight, neg_weight):
    """Fused-XLA fallback for tiny inputs (kernel-launch overhead dominates)."""
    x = logit_flat.astype(jnp.float32)
    y = truth_flat.astype(jnp.float32)
    loss = jnp.maximum(x, 0.0) - x * y + jnp.log1p(jnp.exp(-jnp.abs(x)))
    pos = (y > 0.5).astype(jnp.float32)
    neg = (y < 0.5).astype(jnp.float32)
    pos_sum = jnp.sum(pos) + 1e-12
    neg_sum = jnp.sum(neg) + 1e-12
    return jnp.sum(pos_weight * pos * loss / pos_sum
                   + neg_weight * neg * loss / neg_sum)


def weighted_bce_loss(logit, truth, pos_weight=0.75, neg_weight=0.25,
                      *, force_pallas=False):
    """Pallas implementation of WeightedBCELoss.forward.

    logit, truth: (B, C, H, W) with H*W == 1 (the original `.view(B, C)`
    requires it).  Returns a scalar float32 loss.
    """
    B, C, H, W = logit.shape
    assert logit.shape == truth.shape
    assert H * W == 1, "original module's view(B, C) requires H*W == 1"

    n = B * C
    logit_flat = logit.reshape(n)                 # native dtype, no upcast here
    truth_flat = truth.reshape(n)
    if truth_flat.dtype == jnp.bool_:
        truth_flat = truth_flat.astype(jnp.int8)  # keep the stream narrow

    if not force_pallas and n < _MIN_PALLAS_ELEMENTS:
        return _wbce_xla(logit_flat, truth_flat, pos_weight, neg_weight)

    # Lane-dense layout: (rows, 128); pad only to (32, 128) granularity (often
    # zero pad).  Padded elements are masked in-kernel via element-index < n.
    rows = _round_up(pl.cdiv(n, _LANES), _SUBLANE_PAD)
    tile_rows = min(_MAX_TILE_ROWS, rows)
    pad = rows * _LANES - n
    if pad:
        logit_flat = jnp.pad(logit_flat, (0, pad))
        truth_flat = jnp.pad(truth_flat, (0, pad))
    logit2d = logit_flat.reshape(rows, _LANES)
    truth2d = truth_flat.reshape(rows, _LANES)

    num_tiles = pl.cdiv(rows, tile_rows)
    # Two chunks engage both TensorCores on v7x via the "parallel" axis; on
    # 1-TC chips (v5e/v6e) the chunks simply run back-to-back on one core.
    num_chunks = 2 if num_tiles >= 2 else 1
    tiles_per_chunk = pl.cdiv(num_tiles, num_chunks)

    def in_map(c, t):
        # Clamp duplicated trailing iterations so every DMA stays in bounds;
        # their contribution is zeroed by the in-kernel validity mask.
        return (jnp.minimum(c * tiles_per_chunk + t, num_tiles - 1), 0)

    kernel = _make_wbce_kernel(n, tile_rows, tiles_per_chunk)

    out_shape = jax.ShapeDtypeStruct((num_chunks, 4, 8, _LANES), jnp.float32)
    in_bytes = (logit2d.size * logit2d.dtype.itemsize
                + truth2d.size * truth2d.dtype.itemsize)
    out_bytes = num_chunks * 4 * 8 * _LANES * 4

    partials = pl.pallas_call(
        kernel,
        out_shape=out_shape,
        grid=(num_chunks, tiles_per_chunk),
        in_specs=[
            pl.BlockSpec((tile_rows, _LANES), in_map),
            pl.BlockSpec((tile_rows, _LANES), in_map),
        ],
        out_specs=pl.BlockSpec((1, 4, 8, _LANES), lambda c, t: (c, 0, 0, 0)),
        compiler_params=pltpu.CompilerParams(
            dimension_semantics=("parallel", "arbitrary"),
            vmem_limit_bytes=32 * 1024 * 1024),
        cost_estimate=pl.CostEstimate(
            flops=16 * n,
            transcendentals=2 * n,
            bytes_accessed=in_bytes + out_bytes),
    )(logit2d, truth2d)

    # Tiny XLA epilogue: single cross-lane reduction of the per-chunk partials,
    # then weights + normalization (no recompile when weights change).
    sums = jnp.sum(partials, axis=(0, 2, 3))      # (4,)
    pos_sum = sums[0] + 1e-12
    neg_sum = sums[1] + 1e-12
    return pos_weight * sums[2] / pos_sum + neg_weight * sums[3] / neg_sum


def _reference_loss(logit, truth, pos_weight=0.75, neg_weight=0.25):
    B, C, H, W = logit.shape
    x = logit.reshape(B, C).astype(jnp.float32)
    y = truth.reshape(B, C).astype(jnp.float32)
    loss = jnp.maximum(x, 0.0) - x * y + jnp.log1p(jnp.exp(-jnp.abs(x)))
    pos = (y > 0.5).astype(jnp.float32)
    neg = (y < 0.5).astype(jnp.float32)
    pos_sum = jnp.sum(pos) + 1e-12
    neg_sum = jnp.sum(neg) + 1e-12
    return jnp.sum(pos_weight * pos * loss / pos_sum
                   + neg_weight * neg * loss / neg_sum)


if __name__ == "__main__":
    key = jax.random.PRNGKey(0)
    keys = jax.random.split(key, 6)

    # 1) Tiny, module-consistent shape: force the Pallas kernel, then the
    #    auto-dispatched fused-XLA path.
    B, C = 2, 4  # view(B, C) requires H = W = 1
    logit_s = jax.random.normal(keys[0], (B, C, 1, 1), dtype=jnp.float32)
    truth_s = jax.random.bernoulli(keys[1], 0.5, (B, C, 1, 1)).astype(jnp.float32)
    ref_s = _reference_loss(logit_s, truth_s, 0.75, 0.25)
    got_s = jax.block_until_ready(
        weighted_bce_loss(logit_s, truth_s, 0.75, 0.25, force_pallas=True))
    assert jnp.allclose(got_s, ref_s, rtol=1e-4, atol=1e-6), (got_s, ref_s)
    got_s2 = jax.block_until_ready(weighted_bce_loss(logit_s, truth_s, 0.75, 0.25))
    assert jnp.allclose(got_s2, ref_s, rtol=1e-4, atol=1e-6), (got_s2, ref_s)

    # 2) Multi-tile, 2-chunk grid; f32 logits + int8 truth streamed natively.
    Bm, Cm = 512, 600     # 307200 elems -> 2 row-tiles -> grid (2, 1), ragged tail
    logit_m = jax.random.normal(keys[2], (Bm, Cm, 1, 1), dtype=jnp.float32)
    truth_m = jax.random.bernoulli(keys[3], 0.35, (Bm, Cm, 1, 1)).astype(jnp.int8)
    ref_m = _reference_loss(logit_m, truth_m.astype(jnp.float32), 0.75, 0.25)
    got_m = jax.block_until_ready(weighted_bce_loss(logit_m, truth_m, 0.75, 0.25))
    assert jnp.allclose(got_m, ref_m, rtol=1e-4, atol=1e-5), (got_m, ref_m)

    # 3) Odd tile count (exercises index clamping) with native bf16 streams.
    Bl, Cl = 512, 1200    # 614400 elems -> 3 row-tiles -> grid (2, 2), one clamped
    logit_l = jax.random.normal(keys[4], (Bl, Cl, 1, 1), dtype=jnp.bfloat16)
    truth_l = jax.random.bernoulli(keys[5], 0.5, (Bl, Cl, 1, 1)).astype(jnp.bfloat16)
    ref_l = _reference_loss(logit_l.astype(jnp.float32),
                            truth_l.astype(jnp.float32), 0.75, 0.25)
    got_l = jax.block_until_ready(weighted_bce_loss(logit_l, truth_l, 0.75, 0.25))
    assert jnp.allclose(got_l, ref_l, rtol=2e-3, atol=1e-4), (got_l, ref_l)

    print("KERNEL_OK")
</pallas_src>

<mosaic_0001>
module attributes {stable_mosaic.version = 11 : i64} {
  func.func @kernel(%arg0: i32, %arg1: i32, %arg2: memref<32x128xf32, #tpu.memory_space<vmem>>, %arg3: memref<32x128xf32, #tpu.memory_space<vmem>>, %arg4: memref<1x4x8x128xf32, #tpu.memory_space<vmem>>) attributes {dimension_semantics = [#tpu.dimension_semantics<parallel>, #tpu.dimension_semantics<arbitrary>], iteration_bounds = array<i64: 1, 1>, scalar_prefetch = 0 : i64, scratch_operands = 0 : i64, tpu.core_type = #tpu.core_type<tc>, window_params = [{transform_indices = @transform_0, window_bounds = array<i64: 32, 128>}, {transform_indices = @transform_1, window_bounds = array<i64: 32, 128>}, {transform_indices = @transform_2, window_bounds = array<i64: 1, 4, 8, 128>}]} {
    %c0_i32 = arith.constant 0 : i32
    %0 = arith.cmpi eq, %arg1, %c0_i32 : i32
    %1 = arith.extui %0 : i1 to i32
    %c0_i32_0 = arith.constant 0 : i32
    %2 = arith.cmpi ne, %1, %c0_i32_0 : i32
    scf.if %2 {
      %cst_42 = arith.constant 0.000000e+00 : f32
      %71 = vector.broadcast %cst_42 : f32 to vector<1x4x8x128xf32>
      %c0_43 = arith.constant 0 : index
      %c0_44 = arith.constant 0 : index
      %c0_45 = arith.constant 0 : index
      %c0_46 = arith.constant 0 : index
      %72 = vector.load %arg4[%c0_43, %c0_44, %c0_45, %c0_46] : memref<1x4x8x128xf32, #tpu.memory_space<vmem>>, vector<1x4x8x128xf32>
      tpu.vector_store %arg4[%c0_43, %c0_44, %c0_45, %c0_46], %71 {strides = array<i32>} : memref<1x4x8x128xf32, #tpu.memory_space<vmem>>, vector<1x4x8x128xf32>,
    } else {
    }
    %c0 = arith.constant 0 : index
    %c0_1 = arith.constant 0 : index
    %3 = vector.load %arg2[%c0, %c0_1] : memref<32x128xf32, #tpu.memory_space<vmem>>, vector<32x128xf32>
    %c0_2 = arith.constant 0 : index
    %c0_3 = arith.constant 0 : index
    %4 = vector.load %arg3[%c0_2, %c0_3] : memref<32x128xf32, #tpu.memory_space<vmem>>, vector<32x128xf32>
    %c1_i32 = arith.constant 1 : i32
    %5 = arith.muli %arg0, %c1_i32 : i32
    %6 = arith.addi %5, %arg1 : i32
    %c32_i32 = arith.constant 32 : i32
    %7 = arith.muli %6, %c32_i32 : i32
    %8 = tpu.iota {dimensions = array<i32: 0>} : vector<32x128xi32>
    %9 = vector.broadcast %7 : i32 to vector<32x128xi32>
    %10 = arith.addi %9, %8 : vector<32x128xi32>
    %11 = tpu.iota {dimensions = array<i32: 1>} : vector<32x128xi32>
    %c128_i32 = arith.constant 128 : i32
    %12 = vector.broadcast %c128_i32 : i32 to vector<32x128xi32>
    %13 = arith.muli %10, %12 : vector<32x128xi32>
    %14 = arith.addi %13, %11 : vector<32x128xi32>
    %c8_i32 = arith.constant 8 : i32
    %15 = vector.broadcast %c8_i32 : i32 to vector<32x128xi32>
    %16 = arith.cmpi slt, %14, %15 : vector<32x128xi32>
    %cst = arith.constant 0.000000e+00 : f32
    %17 = vector.broadcast %cst : f32 to vector<32x128xf32>
    %18 = arith.maximumf %3, %17 : vector<32x128xf32>
    %19 = arith.mulf %3, %4 : vector<32x128xf32>
    %20 = arith.subf %18, %19 : vector<32x128xf32>
    %21 = math.absf %3 : vector<32x128xf32>
    %cst_4 = arith.constant 0.000000e+00 : f32
    %22 = vector.broadcast %cst_4 : f32 to vector<32x128xf32>
    %23 = arith.subf %22, %21 : vector<32x128xf32>
    %24 = math.exp %23 : vector<32x128xf32>
    %25 = math.log1p %24 : vector<32x128xf32>
    %26 = arith.addf %20, %25 : vector<32x128xf32>
    %cst_5 = arith.constant 5.000000e-01 : f32
    %27 = vector.broadcast %cst_5 : f32 to vector<32x128xf32>
    %28 = arith.cmpf ogt, %4, %27 : vector<32x128xf32>
    %29 = arith.andi %16, %28 : vector<32x128xi1>
    %cst_6 = arith.constant 5.000000e-01 : f32
    %30 = vector.broadcast %cst_6 : f32 to vector<32x128xf32>
    %31 = arith.cmpf olt, %4, %30 : vector<32x128xf32>
    %32 = arith.andi %16, %31 : vector<32x128xi1>
    %cst_7 = arith.constant 0.000000e+00 : f32
    %33 = vector.broadcast %cst_7 : f32 to vector<32x128xf32>
    %cst_8 = arith.constant 1.000000e+00 : f32
    %34 = vector.broadcast %cst_8 : f32 to vector<32x128xf32>
    %c0_9 = arith.constant 0 : index
    %c0_10 = arith.constant 0 : index
    %c0_11 = arith.constant 0 : index
    %c0_12 = arith.constant 0 : index
    %35 = vector.load %arg4[%c0_9, %c0_10, %c0_11, %c0_12] : memref<1x4x8x128xf32, #tpu.memory_space<vmem>>, vector<1x1x8x128xf32>
    %36 = vector.shape_cast %35 : vector<1x1x8x128xf32> to vector<8x128xf32>
    %37 = arith.select %29, %34, %33 : vector<32x128xi1>, vector<32x128xf32>
    %38 = vector.shape_cast %37 : vector<32x128xf32> to vector<4x8x128xf32>
    %cst_13 = arith.constant dense<0.000000e+00> : vector<8x128xf32>
    %39 = vector.multi_reduction <add>, %38, %cst_13 [0] : vector<4x8x128xf32> to vector<8x128xf32>
    %40 = arith.addf %36, %39 : vector<8x128xf32>
    %c0_14 = arith.constant 0 : index
    %c0_15 = arith.constant 0 : index
    %c0_16 = arith.constant 0 : index
    %c0_17 = arith.constant 0 : index
    %41 = vector.load %arg4[%c0_14, %c0_15, %c0_16, %c0_17] : memref<1x4x8x128xf32, #tpu.memory_space<vmem>>, vector<1x1x8x128xf32>
    %42 = vector.shape_cast %41 : vector<1x1x8x128xf32> to vector<8x128xf32>
    %43 = vector.shape_cast %40 : vector<8x128xf32> to vector<1x1x8x128xf32>
    tpu.vector_store %arg4[%c0_14, %c0_15, %c0_16, %c0_17], %43 {strides = array<i32>} : memref<1x4x8x128xf32, #tpu.memory_space<vmem>>, vector<1x1x8x128xf32>,
    %c0_18 = arith.constant 0 : index
    %c1 = arith.constant 1 : index
    %c0_19 = arith.constant 0 : index
    %c0_20 = arith.constant 0 : index
    %44 = vector.load %arg4[%c0_18, %c1, %c0_19, %c0_20] : memref<1x4x8x128xf32, #tpu.memory_space<vmem>>, vector<1x1x8x128xf32>
    %45 = vector.shape_cast %44 : vector<1x1x8x128xf32> to vector<8x128xf32>
    %46 = arith.select %32, %34, %33 : vector<32x128xi1>, vector<32x128xf32>
    %47 = vector.shape_cast %46 : vector<32x128xf32> to vector<4x8x128xf32>
    %cst_21 = arith.constant dense<0.000000e+00> : vector<8x128xf32>
    %48 = vector.multi_reduction <add>, %47, %cst_21 [0] : vector<4x8x128xf32> to vector<8x128xf32>
    %49 = arith.addf %45, %48 : vector<8x128xf32>
    %c0_22 = arith.constant 0 : index
    %c1_23 = arith.constant 1 : index
    %c0_24 = arith.constant 0 : index
    %c0_25 = arith.constant 0 : index
    %50 = vector.load %arg4[%c0_22, %c1_23, %c0_24, %c0_25] : memref<1x4x8x128xf32, #tpu.memory_space<vmem>>, vector<1x1x8x128xf32>
    %51 = vector.shape_cast %50 : vector<1x1x8x128xf32> to vector<8x128xf32>
    %52 = vector.shape_cast %49 : vector<8x128xf32> to vector<1x1x8x128xf32>
    tpu.vector_store %arg4[%c0_22, %c1_23, %c0_24, %c0_25], %52 {strides = array<i32>} : memref<1x4x8x128xf32, #tpu.memory_space<vmem>>, vector<1x1x8x128xf32>,
    %c0_26 = arith.constant 0 : index
    %c2 = arith.constant 2 : index
    %c0_27 = arith.constant 0 : index
    %c0_28 = arith.constant 0 : index
    %53 = vector.load %arg4[%c0_26, %c2, %c0_27, %c0_28] : memref<1x4x8x128xf32, #tpu.memory_space<vmem>>, vector<1x1x8x128xf32>
    %54 = vector.shape_cast %53 : vector<1x1x8x128xf32> to vector<8x128xf32>
    %55 = arith.select %29, %26, %33 : vector<32x128xi1>, vector<32x128xf32>
    %56 = vector.shape_cast %55 : vector<32x128xf32> to vector<4x8x128xf32>
    %cst_29 = arith.constant dense<0.000000e+00> : vector<8x128xf32>
    %57 = vector.multi_reduction <add>, %56, %cst_29 [0] : vector<4x8x128xf32> to vector<8x128xf32>
    %58 = arith.addf %54, %57 : vector<8x128xf32>
    %c0_30 = arith.constant 0 : index
    %c2_31 = arith.constant 2 : index
    %c0_32 = arith.constant 0 : index
    %c0_33 = arith.constant 0 : index
    %59 = vector.load %arg4[%c0_30, %c2_31, %c0_32, %c0_33] : memref<1x4x8x128xf32, #tpu.memory_space<vmem>>, vector<1x1x8x128xf32>
    %60 = vector.shape_cast %59 : vector<1x1x8x128xf32> to vector<8x128xf32>
    %61 = vector.shape_cast %58 : vector<8x128xf32> to vector<1x1x8x128xf32>
    tpu.vector_store %arg4[%c0_30, %c2_31, %c0_32, %c0_33], %61 {strides = array<i32>} : memref<1x4x8x128xf32, #tpu.memory_space<vmem>>, vector<1x1x8x128xf32>,
    %c0_34 = arith.constant 0 : index
    %c3 = arith.constant 3 : index
    %c0_35 = arith.constant 0 : index
    %c0_36 = arith.constant 0 : index
    %62 = vector.load %arg4[%c0_34, %c3, %c0_35, %c0_36] : memref<1x4x8x128xf32, #tpu.memory_space<vmem>>, vector<1x1x8x128xf32>
    %63 = vector.shape_cast %62 : vector<1x1x8x128xf32> to vector<8x128xf32>
    %64 = arith.select %32, %26, %33 : vector<32x128xi1>, vector<32x128xf32>
    %65 = vector.shape_cast %64 : vector<32x128xf32> to vector<4x8x128xf32>
    %cst_37 = arith.constant dense<0.000000e+00> : vector<8x128xf32>
    %66 = vector.multi_reduction <add>, %65, %cst_37 [0] : vector<4x8x128xf32> to vector<8x128xf32>
    %67 = arith.addf %63, %66 : vector<8x128xf32>
    %c0_38 = arith.constant 0 : index
    %c3_39 = arith.constant 3 : index
    %c0_40 = arith.constant 0 : index
    %c0_41 = arith.constant 0 : index
    %68 = vector.load %arg4[%c0_38, %c3_39, %c0_40, %c0_41] : memref<1x4x8x128xf32, #tpu.memory_space<vmem>>, vector<1x1x8x128xf32>
    %69 = vector.shape_cast %68 : vector<1x1x8x128xf32> to vector<8x128xf32>
    %70 = vector.shape_cast %67 : vector<8x128xf32> to vector<1x1x8x128xf32>
    tpu.vector_store %arg4[%c0_38, %c3_39, %c0_40, %c0_41], %70 {strides = array<i32>} : memref<1x4x8x128xf32, #tpu.memory_space<vmem>>, vector<1x1x8x128xf32>,
    return
  }
  func.func @transform_0(%arg0: i32, %arg1: i32) -> (i32, i32) {
    %c1_i32 = arith.constant 1 : i32
    %0 = arith.muli %arg0, %c1_i32 : i32
    %1 = arith.addi %0, %arg1 : i32
    %c0_i32 = arith.constant 0 : i32
    %2 = arith.minsi %1, %c0_i32 : i32
    %c0_i32_0 = arith.constant 0 : i32
    %c0_i32_1 = arith.constant 0 : i32
    return %2, %c0_i32_0 : i32, i32
  }
  func.func @transform_1(%arg0: i32, %arg1: i32) -> (i32, i32) {
    %c1_i32 = arith.constant 1 : i32
    %0 = arith.muli %arg0, %c1_i32 : i32
    %1 = arith.addi %0, %arg1 : i32
    %c0_i32 = arith.constant 0 : i32
    %2 = arith.minsi %1, %c0_i32 : i32
    %c0_i32_0 = arith.constant 0 : i32
    %c0_i32_1 = arith.constant 0 : i32
    return %2, %c0_i32_0 : i32, i32
  }
  func.func @transform_2(%arg0: i32, %arg1: i32) -> (i32, i32, i32, i32) {
    %c0_i32 = arith.constant 0 : i32
    %c0_i32_0 = arith.constant 0 : i32
    %c0_i32_1 = arith.constant 0 : i32
    %c0_i32_2 = arith.constant 0 : i32
    return %arg0, %c0_i32, %c0_i32_0, %c0_i32_1 : i32, i32, i32, i32
  }
}

</mosaic_0001>

<llo_original>
// kernel: tpu_custom_call.1
$region0: #{tpu_custom_call.1}
  #allocation0 [shape = 'u32[]', space=smem, size = 0x4, offset = 0x4, fixed_abs, tag = 'smem constant byte address 0x4 - core index']
  #allocation1 [shape = 'u32[144,128]{1,0:T(1,128)}', space=vmem, size = 0x12000, scoped, tag = 'internal scratch']
  %s0 = inlined_call_operand.hbm [shape: f32[32,128], index: 0, kind: input, shape index: {}]
  %s1 = inlined_call_operand.hbm [shape: f32[32,128], index: 1, kind: input, shape index: {}]
  %s2 = inlined_call_operand.hbm [shape: f32[1,4,8,128], index: 2, kind: output, shape index: {}]
  %s3 = sld [smem:[#allocation0]]
  $region30: #{tpu_custom_call.1} parent=0
    _
  %s5 = ssub.s32 1, %s3
  %s6 = scalar_select 0, %s5, %s3
  $region1: #{tpu_custom_call.1} parent=0
    #allocation2 [shape = 'u8[16384]{0}', space=vmem, size = 0x4000, scoped, tag = 'input window, operand 0, single buffered']
    #allocation3 [shape = 's32[1]{0}', space=sflag, size = 0x4, scoped, tag = 'scoped memory for tpu_custom_call.1']
    #allocation4 [shape = 's32[1]{0}', space=sflag, size = 0x4, scoped, tag = 'scoped memory for tpu_custom_call.1']
    #allocation5 [shape = 'u8[16384]{0}', space=vmem, size = 0x4000, scoped, tag = 'input window, operand 1, single buffered']
    #allocation6 [shape = 's32[1]{0}', space=sflag, size = 0x4, scoped, tag = 'scoped memory for tpu_custom_call.1']
    #allocation7 [shape = 'u8[16384]{0}', space=vmem, size = 0x4000, scoped, tag = 'output window, operand 0, single buffered']
    %7 = vsyncpa [#allocation3], 0
    %8 = vsyncpa [#allocation6], 0
    %9 = vsyncpa [#allocation4], 0
    // Predicated region
    $region2: #{tpu_custom_call.1} parent=1 // pred_check
      _
    $region3: #{tpu_custom_call.1} parent=1 // pred_check_branch
      %11 = sbr.rel (0) target = $region5
    $region4: #{tpu_custom_call.1} parent=1 // pred_region
      %s12 = sadd.s32 0, 0
      %p13 = scmp.lt.s32.totalorder %s12, 0
      %s14 = scalar_select %p13, %s12, 0
      %s15 = smul.u32 4, %s14
      %s17 = ssub.s32 512, 512
      %18 = vsyncadd [#allocation3], %s17
      %s19 = smul.addr %s15, 128
      %s20 = scalar_lea.hbm %s0, %s19
      %s21 = sshll.u32 [#allocation2], 4
      %s22 = int_to_ptr.vmem [resolvable:$true] %s21
      %27 = dma.hbm_to_vmem [thread:$0]  %s20, 512, %s22, [#allocation3], 128, 128, 8
    $region5: #{tpu_custom_call.1} parent=1 // pred_fallthru
      _
    // Predicated region
    $region6: #{tpu_custom_call.1} parent=1 // pred_check
      _
    $region7: #{tpu_custom_call.1} parent=1 // pred_check_branch
      %29 = sbr.rel (0) target = $region9
    $region8: #{tpu_custom_call.1} parent=1 // pred_region
      %s30 = sadd.s32 0, 0
      %p31 = scmp.lt.s32.totalorder %s30, 0
      %s32 = scalar_select %p31, %s30, 0
      %s33 = smul.u32 4, %s32
      %s35 = ssub.s32 512, 512
      %36 = vsyncadd [#allocation6], %s35
      %s37 = smul.addr %s33, 128
      %s38 = scalar_lea.hbm %s1, %s37
      %s39 = sshll.u32 [#allocation5], 4
      %s40 = int_to_ptr.vmem [resolvable:$true] %s39
      %45 = dma.hbm_to_vmem [thread:$0]  %s38, 512, %s40, [#allocation6], 128, 128, 8
    $region9: #{tpu_custom_call.1} parent=1 // pred_fallthru
      _
    // Predicated region
    $region10: #{tpu_custom_call.1} parent=1 // pred_check
      _
    $region11: #{tpu_custom_call.1} parent=1 // pred_check_branch
      %47 = sbr.rel (0) target = $region13
    $region12: #{tpu_custom_call.1} parent=1 // pred_region
      %48 = dma.done [#allocation3], 512
    $region13: #{tpu_custom_call.1} parent=1 // pred_fallthru
      _
    // Predicated region
    $region14: #{tpu_custom_call.1} parent=1 // pred_check
      _
    $region15: #{tpu_custom_call.1} parent=1 // pred_check_branch
      %50 = sbr.rel (0) target = $region17
    $region16: #{tpu_custom_call.1} parent=1 // pred_region
      %51 = dma.done [#allocation6], 512
    $region17: #{tpu_custom_call.1} parent=1 // pred_fallthru
      _
    %s52 = sadd.s32 0, 0
    %p53 = scmp.lt.s32.totalorder %s52, 0
    %s54 = scalar_select %p53, %s52, 0
    %s55 = smul.u32 4, %s54
    %s56 = sadd.s32 0, 0
    %p57 = scmp.lt.s32.totalorder %s56, 0
    %s58 = scalar_select %p57, %s56, 0
    %s59 = smul.u32 4, %s58
    %p60 = scmp.eq.s32.totalorder 0, 0
    // Predicated region
    $region18: #{tpu_custom_call.1} parent=1 // pred_check
      %p61 = pneg %p60
    $region19: #{tpu_custom_call.1} parent=1 // pred_check_branch
      %63 = sbr.rel (%p61) target = $region21
    $region20: #{tpu_custom_call.1} parent=1 // pred_region
      %64 = vst [vmem:[#allocation7] sm:$0xff] 0.0
      %65 = vst [vmem:[#allocation7 + $0x8] sm:$0xff] 0.0
      %66 = vst [vmem:[#allocation7 + $0x10] sm:$0xff] 0.0
      %67 = vst [vmem:[#allocation7 + $0x18] sm:$0xff] 0.0
    $region21: #{tpu_custom_call.1} parent=1 // pred_fallthru
      _
    %v68 = vld [vmem:[#allocation2] sm:$0xff]
    %v69 = vld [vmem:[#allocation2 + $0x8] sm:$0xff]
    %v70 = vld [vmem:[#allocation2 + $0x10] sm:$0xff]
    %v71 = vld [vmem:[#allocation2 + $0x18] sm:$0xff]
    %v72 = vld [vmem:[#allocation5] sm:$0xff]
    %v73 = vld [vmem:[#allocation5 + $0x8] sm:$0xff]
    %v74 = vld [vmem:[#allocation5 + $0x10] sm:$0xff]
    %v75 = vld [vmem:[#allocation5 + $0x18] sm:$0xff]
    %s76 = sadd.s32 0, 0
    %s77 = smul.u32 %s76, 32
    %v78 = vlaneseq
    %v79 = vshrl.u32 %v78, 7
    %v80 = vadd.s32 %v79, 8
    %v81 = vadd.s32 %v79, 16
    %v82 = vadd.s32 %v79, 24
    %v83 = vstv %s77
    %v84 = vadd.s32 %v83, %v79
    %v85 = vadd.s32 %v83, %v80
    %v86 = vadd.s32 %v83, %v81
    %v87 = vadd.s32 %v83, %v82
    %v88 = vlaneseq
    %v89 = vand.u32 %v88, 127
    %v90 = vmul.u32 %v84, 128
    %v91 = vmul.u32 %v85, 128
    %v92 = vmul.u32 %v86, 128
    %v93 = vmul.u32 %v87, 128
    %v94 = vadd.s32 %v90, %v89
    %v95 = vadd.s32 %v91, %v89
    %v96 = vadd.s32 %v92, %v89
    %v97 = vadd.s32 %v93, %v89
    %vm98 = vcmp.lt.s32.totalorder %v94, 8
    %vm99 = vcmp.lt.s32.totalorder %v95, 8
    %vm100 = vcmp.lt.s32.totalorder %v96, 8
    %vm101 = vcmp.lt.s32.totalorder %v97, 8
    %v102 = vmax.f32 %v68, 0.0
    %v103 = vmax.f32 %v69, 0.0
    %v104 = vmax.f32 %v70, 0.0
    %v105 = vmax.f32 %v71, 0.0
    %v106 = vmul.f32 %v68, %v72
    %v107 = vmul.f32 %v69, %v73
    %v108 = vmul.f32 %v70, %v74
    %v109 = vmul.f32 %v71, %v75
    %v110 = vsub.f32 %v102, %v106
    %v111 = vsub.f32 %v103, %v107
    %v112 = vsub.f32 %v104, %v108
    %v113 = vsub.f32 %v105, %v109
    %v114 = vand.u32 2147483647, %v68
    %v115 = vand.u32 2147483647, %v69
    %v116 = vand.u32 2147483647, %v70
    %v117 = vand.u32 2147483647, %v71
    %v118 = vsub.f32 0.0, %v114
    %v119 = vsub.f32 0.0, %v115
    %v120 = vsub.f32 0.0, %v116
    %v121 = vsub.f32 0.0, %v117
    %v122 = vmul.f32 %v118, 1.442695
    %v123 = vpow.pop %v122
    %v124 = vmul.f32 %v119, 1.442695
    %v125 = vpow.pop %v124
    %v126 = vmul.f32 %v120, 1.442695
    %v127 = vpow.pop %v126
    %v128 = vmul.f32 %v121, 1.442695
    %v129 = vpow.pop %v128
    %v130 = vadd.f32 %v123, 1.0
    %v131 = vlog2.pop %v130
    %v132 = vmul.f32 %v131, 0.6931472
    %v133 = vmul.f32 -0.5, %v123
    %v134 = vadd.f32 %v133, 1.0
    %v135 = vmul.f32 %v134, %v123
    %v136 = vand.u32 2147483647, %v123
    %vm137 = vcmp.lt.f32.partialorder %v136, 0.0004427343
    %v138 = vsel %vm137, %v135, %v132
    %v139 = vadd.f32 %v125, 1.0
    %v140 = vlog2.pop %v139
    %v141 = vmul.f32 %v140, 0.6931472
    %v142 = vmul.f32 -0.5, %v125
    %v143 = vadd.f32 %v142, 1.0
    %v144 = vmul.f32 %v143, %v125
    %v145 = vand.u32 2147483647, %v125
    %vm146 = vcmp.lt.f32.partialorder %v145, 0.0004427343
    %v147 = vsel %vm146, %v144, %v141
    %v148 = vadd.f32 %v127, 1.0
    %v149 = vlog2.pop %v148
    %v150 = vmul.f32 %v149, 0.6931472
    %v151 = vmul.f32 -0.5, %v127
    %v152 = vadd.f32 %v151, 1.0
    %v153 = vmul.f32 %v152, %v127
    %v154 = vand.u32 2147483647, %v127
    %vm155 = vcmp.lt.f32.partialorder %v154, 0.0004427343
    %v156 = vsel %vm155, %v153, %v150
    %v157 = vadd.f32 %v129, 1.0
    %v158 = vlog2.pop %v157
    %v159 = vmul.f32 %v158, 0.6931472
    %v160 = vmul.f32 -0.5, %v129
    %v161 = vadd.f32 %v160, 1.0
    %v162 = vmul.f32 %v161, %v129
    %v163 = vand.u32 2147483647, %v129
    %vm164 = vcmp.lt.f32.partialorder %v163, 0.0004427343
    %v165 = vsel %vm164, %v162, %v159
    %v166 = vadd.f32 %v110, %v138
    %v167 = vadd.f32 %v111, %v147
    %v168 = vadd.f32 %v112, %v156
    %v169 = vadd.f32 %v113, %v165
    %vm170 = vcmp.gt.f32.partialorder %v72, 0.5
    %vm171 = vcmp.gt.f32.partialorder %v73, 0.5
    %vm172 = vcmp.gt.f32.partialorder %v74, 0.5
    %vm173 = vcmp.gt.f32.partialorder %v75, 0.5
    %vm174 = vmand %vm98, %vm170
    %vm175 = vmand %vm99, %vm171
    %vm176 = vmand %vm100, %vm172
    %vm177 = vmand %vm101, %vm173
    %vm178 = vcmp.lt.f32.partialorder %v72, 0.5
    %vm179 = vcmp.lt.f32.partialorder %v73, 0.5
    %vm180 = vcmp.lt.f32.partialorder %v74, 0.5
    %vm181 = vcmp.lt.f32.partialorder %v75, 0.5
    %vm182 = vmand %vm98, %vm178
    %vm183 = vmand %vm99, %vm179
    %vm184 = vmand %vm100, %vm180
    %vm185 = vmand %vm101, %vm181
    %v186 = vld [vmem:[#allocation7] sm:$0xff]
    %v187 = vsel %vm174, 1.0, 0.0
    %v188 = vsel %vm175, 1.0, 0.0
    %v189 = vsel %vm176, 1.0, 0.0
    %v190 = vsel %vm177, 1.0, 0.0
    %v191 = vadd.f32 %v187, %v188
    %v192 = vadd.f32 %v191, %v189
    %v193 = vadd.f32 %v192, %v190
    %v194 = vadd.f32 %v186, %v193
    %195 = vst [vmem:[#allocation7] sm:$0xff] %v194
    %s196 = scalar_lea.vmem [#allocation7], 8
    %v197 = vld [vmem:[%s196] sm:$0xff]
    %v198 = vsel %vm182, 1.0, 0.0
    %v199 = vsel %vm183, 1.0, 0.0
    %v200 = vsel %vm184, 1.0, 0.0
    %v201 = vsel %vm185, 1.0, 0.0
    %v202 = vadd.f32 %v198, %v199
    %v203 = vadd.f32 %v202, %v200
    %v204 = vadd.f32 %v203, %v201
    %v205 = vadd.f32 %v197, %v204
    %206 = vst [vmem:[%s196] sm:$0xff] %v205
    %s207 = scalar_lea.vmem [#allocation7], 16
    %v208 = vld [vmem:[%s207] sm:$0xff]
    %v209 = vsel %vm174, %v166, 0.0
    %v210 = vsel %vm175, %v167, 0.0
    %v211 = vsel %vm176, %v168, 0.0
    %v212 = vsel %vm177, %v169, 0.0
    %v213 = vadd.f32 %v209, %v210
    %v214 = vadd.f32 %v213, %v211
    %v215 = vadd.f32 %v214, %v212
    %v216 = vadd.f32 %v208, %v215
    %217 = vst [vmem:[%s207] sm:$0xff] %v216
    %s218 = scalar_lea.vmem [#allocation7], 24
    %v219 = vld [vmem:[%s218] sm:$0xff]
    %v220 = vsel %vm182, %v166, 0.0
    %v221 = vsel %vm183, %v167, 0.0
    %v222 = vsel %vm184, %v168, 0.0
    %v223 = vsel %vm185, %v169, 0.0
    %v224 = vadd.f32 %v220, %v221
    %v225 = vadd.f32 %v224, %v222
    %v226 = vadd.f32 %v225, %v223
    %v227 = vadd.f32 %v219, %v226
    %228 = vst [vmem:[%s218] sm:$0xff] %v227
    // Predicated region
    $region22: #{tpu_custom_call.1} parent=1 // pred_check
      _
    $region23: #{tpu_custom_call.1} parent=1 // pred_check_branch
      %230 = sbr.rel (0) target = $region25
    $region24: #{tpu_custom_call.1} parent=1 // pred_region
      %s232 = ssub.s32 512, 512
      %233 = vsyncadd [#allocation4], %s232
      %s234 = sshll.u32 [#allocation7], 4
      %s235 = int_to_ptr.vmem [resolvable:$true] %s234
      %240 = dma.vmem_to_hbm [thread:$0]  %s235, 512, %s2, [#allocation4], 128, 128, 8
    $region25: #{tpu_custom_call.1} parent=1 // pred_fallthru
      _
    // Predicated region
    $region26: #{tpu_custom_call.1} parent=1 // pred_check
      _
    $region27: #{tpu_custom_call.1} parent=1 // pred_check_branch
      %242 = sbr.rel (0) target = $region29
    $region28: #{tpu_custom_call.1} parent=1 // pred_region
      %243 = dma.done [#allocation4], 512
    $region29: #{tpu_custom_call.1} parent=1 // pred_fallthru
      _
    %244 = vsyncpa [#allocation3], 1
    %245 = vsyncpa [#allocation6], 1
    %246 = vsyncpa [#allocation4], 1

</llo_original>
